<compile_context>
chip_gen: v5e
topology: v5e:2x2
jax: 0.10.0
libtpu: 0.0.40
codegen_flags: <defaults>
</compile_context>

<pallas_src>
import jax
import jax.numpy as jnp
from jax.experimental import pallas as pl
from jax.experimental.pallas import tpu as pltpu


def _round_up(x, m):
    return (x + m - 1) // m * m


def _softplus(x):
    # torch.nn.Softplus(beta=1, threshold=20): identity above the threshold.
    # exp only overflows for x > ~88, where `where` already selects x, so no
    # extra clamp is needed.
    return jnp.where(x > 20.0, x, jnp.log1p(jnp.exp(x)))


def _pdn_kernel(x_ref,
                w1, b1, w2, b2, w3, b3, w4, b4, w5, b5, w6, b6, w7, b7,
                o_ref):
    x = x_ref[...]                                     # [TN, 1] f32

    # dense_1: in=1 -> 256.  K=1 matmul == broadcast multiply on the VPU.
    h = _softplus(x * w1[...] + b1[...])               # [TN, 256] f32

    def dense(h, w_ref, b_ref):
        # Cast LHS to the weight dtype (bf16 on the fast path), f32 accumulate.
        lhs = h.astype(w_ref.dtype)
        acc = jnp.dot(lhs, w_ref[...], preferred_element_type=jnp.float32)
        return _softplus(acc + b_ref[...])

    h = dense(h, w2, b2)                               # 256 -> 256
    h = dense(h, w3, b3)                               # 256 -> 128
    h = dense(h, w4, b4)                               # 128 -> 128
    h = dense(h, w5, b5)                               # 128 -> 64
    h = dense(h, w6, b6)                               # 64  -> 64

    # output_layer: 64 -> 1 as VPU multiply + lane reduction (f32), then exp.
    y = jnp.sum(h * w7[...], axis=-1, keepdims=True) + b7[...]    # [TN, 1]
    o_ref[...] = jnp.exp(y)


def probability_density_network(x, params, *, block_rows=1024, use_bf16=True,
                                vmem_limit_bytes=32 * 1024 * 1024):
    """x: [N, 1] f32.  params: 7 x (W[in,out], b[1,out]) f32 (PyTorch W^T)."""
    n = x.shape[0]
    assert x.shape == (n, 1) and x.dtype == jnp.float32

    n_layers = len(params)
    flat = []
    for i, (w, b) in enumerate(params):
        w = jnp.asarray(w, jnp.float32)
        b = jnp.asarray(b, jnp.float32).reshape(1, -1)
        if i == n_layers - 1:
            w = w.reshape(1, -1)            # [64,1] -> [1,64] for VPU broadcast
        elif i > 0 and use_bf16:
            w = w.astype(jnp.bfloat16)      # MXU layers: bf16 operands
        flat += [w, b]

    # Batch tile: multiple of 8 sublanes, capped so the working set fits VMEM
    # comfortably on all of v5e/v6e/v7x.
    tn = _round_up(min(block_rows, _round_up(n, 8)), 8)
    n_pad = _round_up(n, tn)
    if n_pad != n:
        x = jnp.pad(x, ((0, n_pad - n), (0, 0)))

    x_spec = pl.BlockSpec((tn, 1), lambda i: (i, 0))
    out_spec = pl.BlockSpec((tn, 1), lambda i: (i, 0))
    # Weights/biases: full-shape blocks, constant index map -> VMEM-resident.
    param_specs = [pl.BlockSpec(a.shape, lambda i: (0, 0)) for a in flat]

    out = pl.pallas_call(
        _pdn_kernel,
        out_shape=jax.ShapeDtypeStruct((n_pad, 1), jnp.float32),
        grid=(n_pad // tn,),
        in_specs=[x_spec] + param_specs,
        out_specs=out_spec,
        compiler_params=pltpu.CompilerParams(
            dimension_semantics=("parallel",),
            vmem_limit_bytes=vmem_limit_bytes),
    )(x, *flat)
    return out[:n]


def init_params(key):
    """Deterministic init mimicking nn.Linear's U(-1/sqrt(fan_in), 1/sqrt(fan_in))."""
    sizes = [(1, 256), (256, 256), (256, 128), (128, 128), (128, 64), (64, 64), (64, 1)]
    params = []
    for (fan_in, fan_out) in sizes:
        key, kw, kb = jax.random.split(key, 3)
        bound = 1.0 / jnp.sqrt(float(fan_in))
        w = jax.random.uniform(kw, (fan_in, fan_out), jnp.float32, -bound, bound)
        b = jax.random.uniform(kb, (1, fan_out), jnp.float32, -bound, bound)
        params.append((w, b))
    return params


def reference_forward(x, params, matmul_dtype=jnp.float32):
    """Pure-JAX reference.  matmul_dtype=bfloat16 mirrors the kernel's
    bf16-operand / f32-accumulate MXU path for the middle layers."""
    n_layers = len(params)
    h = x
    for i, (w, b) in enumerate(params):
        if i == 0:
            h = h * w + b                                         # K == 1
        elif i == n_layers - 1:
            h = jnp.sum(h * w.reshape(1, -1), axis=-1, keepdims=True) + b
        else:
            h = jnp.dot(h.astype(matmul_dtype), w.astype(matmul_dtype),
                        preferred_element_type=jnp.float32) + b
        if i < n_layers - 1:
            h = jnp.where(h > 20.0, h, jnp.log1p(jnp.exp(h)))
    return jnp.exp(h)


if __name__ == "__main__":
    key = jax.random.PRNGKey(0)
    kx, kp = jax.random.split(key)
    params = init_params(kp)

    # 1) Small batch, f32 matmuls: tight check against the f32 reference.
    x_small = jax.random.normal(kx, (8, 1), dtype=jnp.float32)
    out_f32 = jax.block_until_ready(
        probability_density_network(x_small, params, use_bf16=False))
    ref_f32 = reference_forward(x_small, params, jnp.float32)
    assert out_f32.shape == (8, 1), out_f32.shape
    assert jnp.allclose(out_f32, ref_f32, rtol=1e-4, atol=1e-5)

    # 2) Larger, non-tile-multiple batch on the bf16 MXU fast path: compare
    #    against a reference with matching bf16-operand matmuls, plus a loose
    #    sanity check against the pure-f32 reference.
    x_big = jax.random.normal(kx, (200, 1), dtype=jnp.float32)
    out_bf16 = jax.block_until_ready(
        probability_density_network(x_big, params, block_rows=64, use_bf16=True))
    ref_mixed = reference_forward(x_big, params, jnp.bfloat16)
    ref_pure = reference_forward(x_big, params, jnp.float32)
    assert out_bf16.shape == (200, 1), out_bf16.shape
    assert jnp.allclose(out_bf16, ref_mixed, rtol=2e-2, atol=1e-4)
    assert jnp.allclose(out_bf16, ref_pure, rtol=1e-1, atol=1e-3)

    print("KERNEL_OK")
</pallas_src>

<mosaic_0001>
module attributes {stable_mosaic.version = 11 : i64} {
  func.func @_pdn_kernel(%arg0: i32, %arg1: memref<8x1xf32, #tpu.memory_space<vmem>>, %arg2: memref<1x256xf32, #tpu.memory_space<vmem>>, %arg3: memref<1x256xf32, #tpu.memory_space<vmem>>, %arg4: memref<256x256xf32, #tpu.memory_space<vmem>>, %arg5: memref<1x256xf32, #tpu.memory_space<vmem>>, %arg6: memref<256x128xf32, #tpu.memory_space<vmem>>, %arg7: memref<1x128xf32, #tpu.memory_space<vmem>>, %arg8: memref<128x128xf32, #tpu.memory_space<vmem>>, %arg9: memref<1x128xf32, #tpu.memory_space<vmem>>, %arg10: memref<128x64xf32, #tpu.memory_space<vmem>>, %arg11: memref<1x64xf32, #tpu.memory_space<vmem>>, %arg12: memref<64x64xf32, #tpu.memory_space<vmem>>, %arg13: memref<1x64xf32, #tpu.memory_space<vmem>>, %arg14: memref<1x64xf32, #tpu.memory_space<vmem>>, %arg15: memref<1x1xf32, #tpu.memory_space<vmem>>, %arg16: memref<8x1xf32, #tpu.memory_space<vmem>>) attributes {dimension_semantics = [#tpu.dimension_semantics<parallel>], iteration_bounds = array<i64: 1>, scalar_prefetch = 0 : i64, scratch_operands = 0 : i64, tpu.core_type = #tpu.core_type<tc>, window_params = [{transform_indices = @transform_0, window_bounds = array<i64: 8, 1>}, {pipeline_mode = #tpu.pipeline_mode<synchronous>, transform_indices = @transform_1, window_bounds = array<i64: 1, 256>}, {pipeline_mode = #tpu.pipeline_mode<synchronous>, transform_indices = @transform_2, window_bounds = array<i64: 1, 256>}, {pipeline_mode = #tpu.pipeline_mode<synchronous>, transform_indices = @transform_3, window_bounds = array<i64: 256, 256>}, {pipeline_mode = #tpu.pipeline_mode<synchronous>, transform_indices = @transform_4, window_bounds = array<i64: 1, 256>}, {pipeline_mode = #tpu.pipeline_mode<synchronous>, transform_indices = @transform_5, window_bounds = array<i64: 256, 128>}, {pipeline_mode = #tpu.pipeline_mode<synchronous>, transform_indices = @transform_6, window_bounds = array<i64: 1, 128>}, {pipeline_mode = #tpu.pipeline_mode<synchronous>, transform_indices = @transform_7, window_bounds = array<i64: 128, 128>}, {pipeline_mode = #tpu.pipeline_mode<synchronous>, transform_indices = @transform_8, window_bounds = array<i64: 1, 128>}, {pipeline_mode = #tpu.pipeline_mode<synchronous>, transform_indices = @transform_9, window_bounds = array<i64: 128, 64>}, {pipeline_mode = #tpu.pipeline_mode<synchronous>, transform_indices = @transform_10, window_bounds = array<i64: 1, 64>}, {pipeline_mode = #tpu.pipeline_mode<synchronous>, transform_indices = @transform_11, window_bounds = array<i64: 64, 64>}, {pipeline_mode = #tpu.pipeline_mode<synchronous>, transform_indices = @transform_12, window_bounds = array<i64: 1, 64>}, {pipeline_mode = #tpu.pipeline_mode<synchronous>, transform_indices = @transform_13, window_bounds = array<i64: 1, 64>}, {pipeline_mode = #tpu.pipeline_mode<synchronous>, transform_indices = @transform_14, window_bounds = array<i64: 1, 1>}, {transform_indices = @transform_15, window_bounds = array<i64: 8, 1>}]} {
    %c0 = arith.constant 0 : index
    %c0_0 = arith.constant 0 : index
    %0 = vector.load %arg1[%c0, %c0_0] : memref<8x1xf32, #tpu.memory_space<vmem>>, vector<8x1xf32>
    %c0_1 = arith.constant 0 : index
    %c0_2 = arith.constant 0 : index
    %1 = vector.load %arg2[%c0_1, %c0_2] : memref<1x256xf32, #tpu.memory_space<vmem>>, vector<1x256xf32>
    %2 = vector.broadcast %0 : vector<8x1xf32> to vector<8x256xf32>
    %3 = vector.broadcast %1 : vector<1x256xf32> to vector<8x256xf32>
    %4 = arith.mulf %2, %3 : vector<8x256xf32>
    %c0_3 = arith.constant 0 : index
    %c0_4 = arith.constant 0 : index
    %5 = vector.load %arg3[%c0_3, %c0_4] : memref<1x256xf32, #tpu.memory_space<vmem>>, vector<1x256xf32>
    %6 = vector.broadcast %5 : vector<1x256xf32> to vector<8x256xf32>
    %7 = arith.addf %4, %6 : vector<8x256xf32>
    %cst = arith.constant 2.000000e+01 : f32
    %8 = vector.broadcast %cst : f32 to vector<8x256xf32>
    %9 = arith.cmpf ogt, %7, %8 : vector<8x256xf32>
    %10 = math.exp %7 : vector<8x256xf32>
    %11 = math.log1p %10 : vector<8x256xf32>
    %12 = arith.select %9, %7, %11 : vector<8x256xi1>, vector<8x256xf32>
    %c0_5 = arith.constant 0 : index
    %c0_6 = arith.constant 0 : index
    %13 = vector.load %arg4[%c0_5, %c0_6] : memref<256x256xf32, #tpu.memory_space<vmem>>, vector<256x256xf32>
    %cst_7 = arith.constant dense<0.000000e+00> : vector<8x256xf32>
    %14 = tpu.matmul %12, %13, %cst_7 {dimension_numbers = #tpu.dot_dimension_numbers<[1], [0], [0], [1], [0, 0, 1, 1], [], []>} : vector<8x256xf32>, vector<256x256xf32>, vector<8x256xf32> -> vector<8x256xf32>
    %c0_8 = arith.constant 0 : index
    %c0_9 = arith.constant 0 : index
    %15 = vector.load %arg5[%c0_8, %c0_9] : memref<1x256xf32, #tpu.memory_space<vmem>>, vector<1x256xf32>
    %16 = vector.broadcast %15 : vector<1x256xf32> to vector<8x256xf32>
    %17 = arith.addf %14, %16 : vector<8x256xf32>
    %cst_10 = arith.constant 2.000000e+01 : f32
    %18 = vector.broadcast %cst_10 : f32 to vector<8x256xf32>
    %19 = arith.cmpf ogt, %17, %18 : vector<8x256xf32>
    %20 = math.exp %17 : vector<8x256xf32>
    %21 = math.log1p %20 : vector<8x256xf32>
    %22 = arith.select %19, %17, %21 : vector<8x256xi1>, vector<8x256xf32>
    %c0_11 = arith.constant 0 : index
    %c0_12 = arith.constant 0 : index
    %23 = vector.load %arg6[%c0_11, %c0_12] : memref<256x128xf32, #tpu.memory_space<vmem>>, vector<256x128xf32>
    %cst_13 = arith.constant dense<0.000000e+00> : vector<8x128xf32>
    %24 = tpu.matmul %22, %23, %cst_13 {dimension_numbers = #tpu.dot_dimension_numbers<[1], [0], [0], [1], [0, 0, 1, 1], [], []>} : vector<8x256xf32>, vector<256x128xf32>, vector<8x128xf32> -> vector<8x128xf32>
    %c0_14 = arith.constant 0 : index
    %c0_15 = arith.constant 0 : index
    %25 = vector.load %arg7[%c0_14, %c0_15] : memref<1x128xf32, #tpu.memory_space<vmem>>, vector<1x128xf32>
    %26 = vector.broadcast %25 : vector<1x128xf32> to vector<8x128xf32>
    %27 = arith.addf %24, %26 : vector<8x128xf32>
    %cst_16 = arith.constant 2.000000e+01 : f32
    %28 = vector.broadcast %cst_16 : f32 to vector<8x128xf32>
    %29 = arith.cmpf ogt, %27, %28 : vector<8x128xf32>
    %30 = math.exp %27 : vector<8x128xf32>
    %31 = math.log1p %30 : vector<8x128xf32>
    %32 = arith.select %29, %27, %31 : vector<8x128xi1>, vector<8x128xf32>
    %c0_17 = arith.constant 0 : index
    %c0_18 = arith.constant 0 : index
    %33 = vector.load %arg8[%c0_17, %c0_18] : memref<128x128xf32, #tpu.memory_space<vmem>>, vector<128x128xf32>
    %cst_19 = arith.constant dense<0.000000e+00> : vector<8x128xf32>
    %34 = tpu.matmul %32, %33, %cst_19 {dimension_numbers = #tpu.dot_dimension_numbers<[1], [0], [0], [1], [0, 0, 1, 1], [], []>} : vector<8x128xf32>, vector<128x128xf32>, vector<8x128xf32> -> vector<8x128xf32>
    %c0_20 = arith.constant 0 : index
    %c0_21 = arith.constant 0 : index
    %35 = vector.load %arg9[%c0_20, %c0_21] : memref<1x128xf32, #tpu.memory_space<vmem>>, vector<1x128xf32>
    %36 = vector.broadcast %35 : vector<1x128xf32> to vector<8x128xf32>
    %37 = arith.addf %34, %36 : vector<8x128xf32>
    %cst_22 = arith.constant 2.000000e+01 : f32
    %38 = vector.broadcast %cst_22 : f32 to vector<8x128xf32>
    %39 = arith.cmpf ogt, %37, %38 : vector<8x128xf32>
    %40 = math.exp %37 : vector<8x128xf32>
    %41 = math.log1p %40 : vector<8x128xf32>
    %42 = arith.select %39, %37, %41 : vector<8x128xi1>, vector<8x128xf32>
    %c0_23 = arith.constant 0 : index
    %c0_24 = arith.constant 0 : index
    %43 = vector.load %arg10[%c0_23, %c0_24] : memref<128x64xf32, #tpu.memory_space<vmem>>, vector<128x64xf32>
    %cst_25 = arith.constant dense<0.000000e+00> : vector<8x64xf32>
    %44 = tpu.matmul %42, %43, %cst_25 {dimension_numbers = #tpu.dot_dimension_numbers<[1], [0], [0], [1], [0, 0, 1, 1], [], []>} : vector<8x128xf32>, vector<128x64xf32>, vector<8x64xf32> -> vector<8x64xf32>
    %c0_26 = arith.constant 0 : index
    %c0_27 = arith.constant 0 : index
    %45 = vector.load %arg11[%c0_26, %c0_27] : memref<1x64xf32, #tpu.memory_space<vmem>>, vector<1x64xf32>
    %46 = vector.broadcast %45 : vector<1x64xf32> to vector<8x64xf32>
    %47 = arith.addf %44, %46 : vector<8x64xf32>
    %cst_28 = arith.constant 2.000000e+01 : f32
    %48 = vector.broadcast %cst_28 : f32 to vector<8x64xf32>
    %49 = arith.cmpf ogt, %47, %48 : vector<8x64xf32>
    %50 = math.exp %47 : vector<8x64xf32>
    %51 = math.log1p %50 : vector<8x64xf32>
    %52 = arith.select %49, %47, %51 : vector<8x64xi1>, vector<8x64xf32>
    %c0_29 = arith.constant 0 : index
    %c0_30 = arith.constant 0 : index
    %53 = vector.load %arg12[%c0_29, %c0_30] : memref<64x64xf32, #tpu.memory_space<vmem>>, vector<64x64xf32>
    %cst_31 = arith.constant dense<0.000000e+00> : vector<8x64xf32>
    %54 = tpu.matmul %52, %53, %cst_31 {dimension_numbers = #tpu.dot_dimension_numbers<[1], [0], [0], [1], [0, 0, 1, 1], [], []>} : vector<8x64xf32>, vector<64x64xf32>, vector<8x64xf32> -> vector<8x64xf32>
    %c0_32 = arith.constant 0 : index
    %c0_33 = arith.constant 0 : index
    %55 = vector.load %arg13[%c0_32, %c0_33] : memref<1x64xf32, #tpu.memory_space<vmem>>, vector<1x64xf32>
    %56 = vector.broadcast %55 : vector<1x64xf32> to vector<8x64xf32>
    %57 = arith.addf %54, %56 : vector<8x64xf32>
    %cst_34 = arith.constant 2.000000e+01 : f32
    %58 = vector.broadcast %cst_34 : f32 to vector<8x64xf32>
    %59 = arith.cmpf ogt, %57, %58 : vector<8x64xf32>
    %60 = math.exp %57 : vector<8x64xf32>
    %61 = math.log1p %60 : vector<8x64xf32>
    %62 = arith.select %59, %57, %61 : vector<8x64xi1>, vector<8x64xf32>
    %c0_35 = arith.constant 0 : index
    %c0_36 = arith.constant 0 : index
    %63 = vector.load %arg14[%c0_35, %c0_36] : memref<1x64xf32, #tpu.memory_space<vmem>>, vector<1x64xf32>
    %64 = vector.broadcast %63 : vector<1x64xf32> to vector<8x64xf32>
    %65 = arith.mulf %62, %64 : vector<8x64xf32>
    %cst_37 = arith.constant dense<0.000000e+00> : vector<8xf32>
    %66 = vector.multi_reduction <add>, %65, %cst_37 [1] : vector<8x64xf32> to vector<8xf32>
    %67 = vector.shape_cast %66 : vector<8xf32> to vector<8x1xf32>
    %c0_38 = arith.constant 0 : index
    %c0_39 = arith.constant 0 : index
    %68 = vector.load %arg15[%c0_38, %c0_39] : memref<1x1xf32, #tpu.memory_space<vmem>>, vector<1x1xf32>
    %69 = vector.broadcast %68 : vector<1x1xf32> to vector<8x1xf32>
    %70 = arith.addf %67, %69 : vector<8x1xf32>
    %71 = math.exp %70 : vector<8x1xf32>
    %c0_40 = arith.constant 0 : index
    %c0_41 = arith.constant 0 : index
    %72 = vector.load %arg16[%c0_40, %c0_41] : memref<8x1xf32, #tpu.memory_space<vmem>>, vector<8x1xf32>
    tpu.vector_store %arg16[%c0_40, %c0_41], %71 {strides = array<i32>} : memref<8x1xf32, #tpu.memory_space<vmem>>, vector<8x1xf32>,
    return
  }
  func.func @transform_0(%arg0: i32) -> (i32, i32) {
    %c0_i32 = arith.constant 0 : i32
    %c0_i32_0 = arith.constant 0 : i32
    return %arg0, %c0_i32 : i32, i32
  }
  func.func @transform_1(%arg0: i32) -> (i32, i32) {
    %c0_i32 = arith.constant 0 : i32
    %c0_i32_0 = arith.constant 0 : i32
    %c0_i32_1 = arith.constant 0 : i32
    return %c0_i32, %c0_i32_0 : i32, i32
  }
  func.func @transform_2(%arg0: i32) -> (i32, i32) {
    %c0_i32 = arith.constant 0 : i32
    %c0_i32_0 = arith.constant 0 : i32
    %c0_i32_1 = arith.constant 0 : i32
    return %c0_i32, %c0_i32_0 : i32, i32
  }
  func.func @transform_3(%arg0: i32) -> (i32, i32) {
    %c0_i32 = arith.constant 0 : i32
    %c0_i32_0 = arith.constant 0 : i32
    %c0_i32_1 = arith.constant 0 : i32
    return %c0_i32, %c0_i32_0 : i32, i32
  }
  func.func @transform_4(%arg0: i32) -> (i32, i32) {
    %c0_i32 = arith.constant 0 : i32
    %c0_i32_0 = arith.constant 0 : i32
    %c0_i32_1 = arith.constant 0 : i32
    return %c0_i32, %c0_i32_0 : i32, i32
  }
  func.func @transform_5(%arg0: i32) -> (i32, i32) {
    %c0_i32 = arith.constant 0 : i32
    %c0_i32_0 = arith.constant 0 : i32
    %c0_i32_1 = arith.constant 0 : i32
    return %c0_i32, %c0_i32_0 : i32, i32
  }
  func.func @transform_6(%arg0: i32) -> (i32, i32) {
    %c0_i32 = arith.constant 0 : i32
    %c0_i32_0 = arith.constant 0 : i32
    %c0_i32_1 = arith.constant 0 : i32
    return %c0_i32, %c0_i32_0 : i32, i32
  }
  func.func @transform_7(%arg0: i32) -> (i32, i32) {
    %c0_i32 = arith.constant 0 : i32
    %c0_i32_0 = arith.constant 0 : i32
    %c0_i32_1 = arith.constant 0 : i32
    return %c0_i32, %c0_i32_0 : i32, i32
  }
  func.func @transform_8(%arg0: i32) -> (i32, i32) {
    %c0_i32 = arith.constant 0 : i32
    %c0_i32_0 = arith.constant 0 : i32
    %c0_i32_1 = arith.constant 0 : i32
    return %c0_i32, %c0_i32_0 : i32, i32
  }
  func.func @transform_9(%arg0: i32) -> (i32, i32) {
    %c0_i32 = arith.constant 0 : i32
    %c0_i32_0 = arith.constant 0 : i32
    %c0_i32_1 = arith.constant 0 : i32
    return %c0_i32, %c0_i32_0 : i32, i32
  }
  func.func @transform_10(%arg0: i32) -> (i32, i32) {
    %c0_i32 = arith.constant 0 : i32
    %c0_i32_0 = arith.constant 0 : i32
    %c0_i32_1 = arith.constant 0 : i32
    return %c0_i32, %c0_i32_0 : i32, i32
  }
  func.func @transform_11(%arg0: i32) -> (i32, i32) {
    %c0_i32 = arith.constant 0 : i32
    %c0_i32_0 = arith.constant 0 : i32
    %c0_i32_1 = arith.constant 0 : i32
    return %c0_i32, %c0_i32_0 : i32, i32
  }
  func.func @transform_12(%arg0: i32) -> (i32, i32) {
    %c0_i32 = arith.constant 0 : i32
    %c0_i32_0 = arith.constant 0 : i32
    %c0_i32_1 = arith.constant 0 : i32
    return %c0_i32, %c0_i32_0 : i32, i32
  }
  func.func @transform_13(%arg0: i32) -> (i32, i32) {
    %c0_i32 = arith.constant 0 : i32
    %c0_i32_0 = arith.constant 0 : i32
    %c0_i32_1 = arith.constant 0 : i32
    return %c0_i32, %c0_i32_0 : i32, i32
  }
  func.func @transform_14(%arg0: i32) -> (i32, i32) {
    %c0_i32 = arith.constant 0 : i32
    %c0_i32_0 = arith.constant 0 : i32
    %c0_i32_1 = arith.constant 0 : i32
    return %c0_i32, %c0_i32_0 : i32, i32
  }
  func.func @transform_15(%arg0: i32) -> (i32, i32) {
    %c0_i32 = arith.constant 0 : i32
    %c0_i32_0 = arith.constant 0 : i32
    return %arg0, %c0_i32 : i32, i32
  }
}

</mosaic_0001>

<llo_original>
// kernel: tpu_custom_call.1
$region0: #{tpu_custom_call.1}
  #allocation0 [shape = 'u32[]', space=smem, size = 0x4, offset = 0x4, fixed_abs, tag = 'smem constant byte address 0x4 - core index']
  #allocation1 [shape = 'u32[72,128]{1,0:T(1,128)}', space=vmem, size = 0x9000, scoped, tag = 'internal scratch']
  #allocation2 [shape = 'f32[1,1]{1,0:T(1,128)S(1)}', space=vmem, size = 0x200, scoped, tag = 'scoped memory for tpu_custom_call.1']
  %s0 = inlined_call_operand.vmem [shape: f32[8,1], index: 0, kind: input, shape index: {}]
  %s1 = inlined_call_operand.vmem [shape: f32[1,256], index: 1, kind: input, shape index: {}]
  %s2 = inlined_call_operand.vmem [shape: f32[1,256], index: 2, kind: input, shape index: {}]
  %s3 = inlined_call_operand.hbm [shape: f32[256,256], index: 3, kind: input, shape index: {}]
  %s4 = inlined_call_operand.vmem [shape: f32[1,256], index: 4, kind: input, shape index: {}]
  %s5 = inlined_call_operand.hbm [shape: f32[256,128], index: 5, kind: input, shape index: {}]
  %s6 = inlined_call_operand.vmem [shape: f32[1,128], index: 6, kind: input, shape index: {}]
  %s7 = inlined_call_operand.vmem [shape: f32[128,128], index: 7, kind: input, shape index: {}]
  %s8 = inlined_call_operand.vmem [shape: f32[1,128], index: 8, kind: input, shape index: {}]
  %s9 = inlined_call_operand.vmem [shape: f32[128,64], index: 9, kind: input, shape index: {}]
  %s10 = inlined_call_operand.vmem [shape: f32[1,64], index: 10, kind: input, shape index: {}]
  %s11 = inlined_call_operand.vmem [shape: f32[64,64], index: 11, kind: input, shape index: {}]
  %s12 = inlined_call_operand.vmem [shape: f32[1,64], index: 12, kind: input, shape index: {}]
  %s13 = inlined_call_operand.vmem [shape: f32[1,64], index: 13, kind: input, shape index: {}]
  %s14 = inlined_call_operand.<no memory space> [shape: f32[1,1], index: 14, kind: input, shape index: {}]
  %s15 = inlined_call_operand.vmem [shape: f32[8,1], index: 15, kind: output, shape index: {}]
  %s16 = sld [smem:[#allocation0]]
  $region78: #{tpu_custom_call.1} parent=0
    _
  %s18 = ssub.s32 1, %s16
  %s19 = scalar_select 0, %s18, %s16
  %v20 = vstv %s14
  %21 = vst [vmem:[#allocation2] sm:$0x1] %v20
  $region1: #{tpu_custom_call.1} parent=0
    #allocation3 [shape = 'u8[262144]{0}', space=vmem, size = 0x40000, scoped, tag = 'input window, operand 3, single buffered']
    #allocation4 [shape = 's32[1]{0}', space=sflag, size = 0x4, scoped, tag = 'scoped memory for tpu_custom_call.1']
    #allocation5 [shape = 'u8[131072]{0}', space=vmem, size = 0x20000, scoped, tag = 'input window, operand 5, single buffered']
    #allocation6 [shape = 's32[1]{0}', space=sflag, size = 0x4, scoped, tag = 'scoped memory for tpu_custom_call.1']
    %22 = vsyncpa [#allocation4], 0
    %23 = vsyncpa [#allocation6], 0
    // Predicated region
    $region2: #{tpu_custom_call.1} parent=1 // pred_check
      _
    $region3: #{tpu_custom_call.1} parent=1 // pred_check_branch
      %25 = sbr.rel (0) target = $region5
    $region4: #{tpu_custom_call.1} parent=1 // pred_region
      _
    $region5: #{tpu_custom_call.1} parent=1 // pred_fallthru
      _
    // Predicated region
    $region6: #{tpu_custom_call.1} parent=1 // pred_check
      _
    $region7: #{tpu_custom_call.1} parent=1 // pred_check_branch
      %27 = sbr.rel (0) target = $region9
    $region8: #{tpu_custom_call.1} parent=1 // pred_region
      _
    $region9: #{tpu_custom_call.1} parent=1 // pred_fallthru
      _
    // Predicated region
    $region10: #{tpu_custom_call.1} parent=1 // pred_check
      _
    $region11: #{tpu_custom_call.1} parent=1 // pred_check_branch
      %29 = sbr.rel (0) target = $region13
    $region12: #{tpu_custom_call.1} parent=1 // pred_region
      _
    $region13: #{tpu_custom_call.1} parent=1 // pred_fallthru
      _
    // Predicated region
    $region14: #{tpu_custom_call.1} parent=1 // pred_check
      _
    $region15: #{tpu_custom_call.1} parent=1 // pred_check_branch
      %31 = sbr.rel (0) target = $region17
    $region16: #{tpu_custom_call.1} parent=1 // pred_region
      %33 = vsyncadd [#allocation4], 0
      %s34 = sshll.u32 %s3, 4
      %s35 = int_to_ptr.hbm [resolvable:$true] %s34
      %s36 = sshll.u32 [#allocation3], 4
      %s37 = int_to_ptr.vmem [resolvable:$true] %s36
      %42 = dma.hbm_to_vmem [thread:$0]  %s35, 8192, %s37, [#allocation4], 256, 256, 16
    $region17: #{tpu_custom_call.1} parent=1 // pred_fallthru
      _
    // Predicated region
    $region18: #{tpu_custom_call.1} parent=1 // pred_check
      _
    $region19: #{tpu_custom_call.1} parent=1 // pred_check_branch
      %44 = sbr.rel (0) target = $region21
    $region20: #{tpu_custom_call.1} parent=1 // pred_region
      _
    $region21: #{tpu_custom_call.1} parent=1 // pred_fallthru
      _
    // Predicated region
    $region22: #{tpu_custom_call.1} parent=1 // pred_check
      _
    $region23: #{tpu_custom_call.1} parent=1 // pred_check_branch
      %46 = sbr.rel (0) target = $region25
    $region24: #{tpu_custom_call.1} parent=1 // pred_region
      %48 = vsyncadd [#allocation6], 0
      %s49 = sshll.u32 %s5, 4
      %s50 = int_to_ptr.hbm [resolvable:$true] %s49
      %s51 = sshll.u32 [#allocation5], 4
      %s52 = int_to_ptr.vmem [resolvable:$true] %s51
      %57 = dma.hbm_to_vmem [thread:$0]  %s50, 4096, %s52, [#allocation6], 128, 128, 8
    $region25: #{tpu_custom_call.1} parent=1 // pred_fallthru
      _
    // Predicated region
    $region26: #{tpu_custom_call.1} parent=1 // pred_check
      _
    $region27: #{tpu_custom_call.1} parent=1 // pred_check_branch
      %59 = sbr.rel (0) target = $region29
    $region28: #{tpu_custom_call.1} parent=1 // pred_region
      _
    $region29: #{tpu_custom_call.1} parent=1 // pred_fallthru
      _
    // Predicated region
    $region30: #{tpu_custom_call.1} parent=1 // pred_check
      _
    $region31: #{tpu_custom_call.1} parent=1 // pred_check_branch
      %61 = sbr.rel (0) target = $region33
    $region32: #{tpu_custom_call.1} parent=1 // pred_region
      _
    $region33: #{tpu_custom_call.1} parent=1 // pred_fallthru
      _
    // Predicated region
    $region34: #{tpu_custom_call.1} parent=1 // pred_check
      _
    $region35: #{tpu_custom_call.1} parent=1 // pred_check_branch
      %63 = sbr.rel (0) target = $region37
    $region36: #{tpu_custom_call.1} parent=1 // pred_region
      _
    $region37: #{tpu_custom_call.1} parent=1 // pred_fallthru
      _
    // Predicated region
    $region38: #{tpu_custom_call.1} parent=1 // pred_check
      _
    $region39: #{tpu_custom_call.1} parent=1 // pred_check_branch
      %65 = sbr.rel (0) target = $region41
    $region40: #{tpu_custom_call.1} parent=1 // pred_region
      _
    $region41: #{tpu_custom_call.1} parent=1 // pred_fallthru
      _
    // Predicated region
    $region42: #{tpu_custom_call.1} parent=1 // pred_check
      _
    $region43: #{tpu_custom_call.1} parent=1 // pred_check_branch
      %67 = sbr.rel (0) target = $region45
    $region44: #{tpu_custom_call.1} parent=1 // pred_region
      _
    $region45: #{tpu_custom_call.1} parent=1 // pred_fallthru
      _
    // Predicated region
    $region46: #{tpu_custom_call.1} parent=1 // pred_check
      _
    $region47: #{tpu_custom_call.1} parent=1 // pred_check_branch
      %69 = sbr.rel (0) target = $region49
    $region48: #{tpu_custom_call.1} parent=1 // pred_region
      _
    $region49: #{tpu_custom_call.1} parent=1 // pred_fallthru
      _
    // Predicated region
    $region50: #{tpu_custom_call.1} parent=1 // pred_check
      _
    $region51: #{tpu_custom_call.1} parent=1 // pred_check_branch
      %71 = sbr.rel (0) target = $region53
    $region52: #{tpu_custom_call.1} parent=1 // pred_region
      _
    $region53: #{tpu_custom_call.1} parent=1 // pred_fallthru
      _
    // Predicated region
    $region54: #{tpu_custom_call.1} parent=1 // pred_check
      _
    $region55: #{tpu_custom_call.1} parent=1 // pred_check_branch
      %73 = sbr.rel (0) target = $region57
    $region56: #{tpu_custom_call.1} parent=1 // pred_region
      _
    $region57: #{tpu_custom_call.1} parent=1 // pred_fallthru
      _
    // Predicated region
    $region58: #{tpu_custom_call.1} parent=1 // pred_check
      _
    $region59: #{tpu_custom_call.1} parent=1 // pred_check_branch
      %75 = sbr.rel (0) target = $region61
    $region60: #{tpu_custom_call.1} parent=1 // pred_region
      _
    $region61: #{tpu_custom_call.1} parent=1 // pred_fallthru
      _
    // Predicated region
    $region62: #{tpu_custom_call.1} parent=1 // pred_check
      _
    $region63: #{tpu_custom_call.1} parent=1 // pred_check_branch
      %77 = sbr.rel (0) target = $region65
    $region64: #{tpu_custom_call.1} parent=1 // pred_region
      %79 = dma.done [#allocation4], 8192
    $region65: #{tpu_custom_call.1} parent=1 // pred_fallthru
      _
    // Predicated region
    $region66: #{tpu_custom_call.1} parent=1 // pred_check
      _
    $region67: #{tpu_custom_call.1} parent=1 // pred_check_branch
      %81 = sbr.rel (0) target = $region69
    $region68: #{tpu_custom_call.1} parent=1 // pred_region
      %83 = dma.done [#allocation6], 4096
    $region69: #{tpu_custom_call.1} parent=1 // pred_fallthru
      _
    %v84 = vld [vmem:[%s0] sm:$0xff]
    %v85 = vld [vmem:[%s1] sm:$0x3]
    %87 = vset.pattern.permute.xlu0 0
    %88 = vperm.xlu0 %87, %v84
    %v89 = vpop.permute.xlu0 %88
    %v92 = vperm.slane %v85, 0
    %v93 = vperm.slane %v85, 1
    %v96 = vmul.f32 %v89, %v92
    %v97 = vmul.f32 %v89, %v93
    %v98 = vld [vmem:[%s2] sm:$0x3]
    %v100 = vperm.slane %v98, 0
    %v101 = vperm.slane %v98, 1
    %v104 = vadd.f32 %v96, %v100
    %v105 = vadd.f32 %v97, %v101
    %vm106 = vcmp.gt.f32.partialorder %v104, 20.0
    %vm107 = vcmp.gt.f32.partialorder %v105, 20.0
    %v108 = vmul.f32 %v104, 1.442695
    %v109 = vpow.pop %v108
    %v110 = vmul.f32 %v105, 1.442695
    %v111 = vpow.pop %v110
    %v112 = vadd.f32 %v109, 1.0
    %v113 = vlog2.pop %v112
    %v114 = vmul.f32 %v113, 0.6931472
    %v115 = vmul.f32 -0.5, %v109
    %v116 = vadd.f32 %v115, 1.0
    %v117 = vmul.f32 %v116, %v109
    %v118 = vand.u32 2147483647, %v109
    %vm119 = vcmp.lt.f32.partialorder %v118, 0.0004427343
    %v120 = vsel %vm119, %v117, %v114
    %v121 = vadd.f32 %v111, 1.0
    %v122 = vlog2.pop %v121
    %v123 = vmul.f32 %v122, 0.6931472
    %v124 = vmul.f32 -0.5, %v111
    %v125 = vadd.f32 %v124, 1.0
    %v126 = vmul.f32 %v125, %v111
    %v127 = vand.u32 2147483647, %v111
    %vm128 = vcmp.lt.f32.partialorder %v127, 0.0004427343
    %v129 = vsel %vm128, %v126, %v123
    %v130 = vsel %vm106, %v104, %v120
    %v131 = vsel %vm107, %v105, %v129
    %v132 = vld [vmem:[#allocation3] sm:$0xff]
    %v133 = vld [vmem:[#allocation3 + $0x8] sm:$0xff]
    %v134 = vld [vmem:[#allocation3 + $0x10] sm:$0xff]
    %v135 = vld [vmem:[#allocation3 + $0x18] sm:$0xff]
    %v136 = vld [vmem:[#allocation3 + $0x20] sm:$0xff]
    %v137 = vld [vmem:[#allocation3 + $0x28] sm:$0xff]
    %v138 = vld [vmem:[#allocation3 + $0x30] sm:$0xff]
    %v139 = vld [vmem:[#allocation3 + $0x38] sm:$0xff]
    %v140 = vld [vmem:[#allocation3 + $0x40] sm:$0xff]
    %v141 = vld [vmem:[#allocation3 + $0x48] sm:$0xff]
    %v142 = vld [vmem:[#allocation3 + $0x50] sm:$0xff]
    %v143 = vld [vmem:[#allocation3 + $0x58] sm:$0xff]
    %v144 = vld [vmem:[#allocation3 + $0x60] sm:$0xff]
    %v145 = vld [vmem:[#allocation3 + $0x68] sm:$0xff]
    %v146 = vld [vmem:[#allocation3 + $0x70] sm:$0xff]
    %v147 = vld [vmem:[#allocation3 + $0x78] sm:$0xff]
    %v148 = vld [vmem:[#allocation3 + $0x80] sm:$0xff]
    %v149 = vld [vmem:[#allocation3 + $0x88] sm:$0xff]
    %v150 = vld [vmem:[#allocation3 + $0x90] sm:$0xff]
    %v151 = vld [vmem:[#allocation3 + $0x98] sm:$0xff]
    %v152 = vld [vmem:[#allocation3 + $0xa0] sm:$0xff]
    %v153 = vld [vmem:[#allocation3 + $0xa8] sm:$0xff]
    %v154 = vld [vmem:[#allocation3 + $0xb0] sm:$0xff]
    %v155 = vld [vmem:[#allocation3 + $0xb8] sm:$0xff]
    %v156 = vld [vmem:[#allocation3 + $0xc0] sm:$0xff]
    %v157 = vld [vmem:[#allocation3 + $0xc8] sm:$0xff]
    %v158 = vld [vmem:[#allocation3 + $0xd0] sm:$0xff]
    %v159 = vld [vmem:[#allocation3 + $0xd8] sm:$0xff]
    %v160 = vld [vmem:[#allocation3 + $0xe0] sm:$0xff]
    %v161 = vld [vmem:[#allocation3 + $0xe8] sm:$0xff]
    %v162 = vld [vmem:[#allocation3 + $0xf0] sm:$0xff]
    %v163 = vld [vmem:[#allocation3 + $0xf8] sm:$0xff]
    %v164 = vld [vmem:[#allocation3 + $0x100] sm:$0xff]
    %v165 = vld [vmem:[#allocation3 + $0x108] sm:$0xff]
    %v166 = vld [vmem:[#allocation3 + $0x110] sm:$0xff]
    %v167 = vld [vmem:[#allocation3 + $0x118] sm:$0xff]
    %v168 = vld [vmem:[#allocation3 + $0x120] sm:$0xff]
    %v169 = vld [vmem:[#allocation3 + $0x128] sm:$0xff]
    %v170 = vld [vmem:[#allocation3 + $0x130] sm:$0xff]
    %v171 = vld [vmem:[#allocation3 + $0x138] sm:$0xff]
    %v172 = vld [vmem:[#allocation3 + $0x140] sm:$0xff]
    %v173 = vld [vmem:[#allocation3 + $0x148] sm:$0xff]
    %v174 = vld [vmem:[#allocation3 + $0x150] sm:$0xff]
    %v175 = vld [vmem:[#allocation3 + $0x158] sm:$0xff]
    %v176 = vld [vmem:[#allocation3 + $0x160] sm:$0xff]
    %v177 = vld [vmem:[#allocation3 + $0x168] sm:$0xff]
    %v178 = vld [vmem:[#allocation3 + $0x170] sm:$0xff]
    %v179 = vld [vmem:[#allocation3 + $0x178] sm:$0xff]
    %v180 = vld [vmem:[#allocation3 + $0x180] sm:$0xff]
    %v181 = vld [vmem:[#allocation3 + $0x188] sm:$0xff]
    %v182 = vld [vmem:[#allocation3 + $0x190] sm:$0xff]
    %v183 = vld [vmem:[#allocation3 + $0x198] sm:$0xff]
    %v184 = vld [vmem:[#allocation3 + $0x1a0] sm:$0xff]
    %v185 = vld [vmem:[#allocation3 + $0x1a8] sm:$0xff]
    %v186 = vld [vmem:[#allocation3 + $0x1b0] sm:$0xff]
    %v187 = vld [vmem:[#allocation3 + $0x1b8] sm:$0xff]
    %v188 = vld [vmem:[#allocation3 + $0x1c0] sm:$0xff]
    %v189 = vld [vmem:[#allocation3 + $0x1c8] sm:$0xff]
    %v190 = vld [vmem:[#allocation3 + $0x1d0] sm:$0xff]
    %v191 = vld [vmem:[#allocation3 + $0x1d8] sm:$0xff]
    %v192 = vld [vmem:[#allocation3 + $0x1e0] sm:$0xff]
    %v193 = vld [vmem:[#allocation3 + $0x1e8] sm:$0xff]
    %v194 = vld [vmem:[#allocation3 + $0x1f0] sm:$0xff]
    %v195 = vld [vmem:[#allocation3 + $0x1f8] sm:$0xff]
    %v196 = vld [vmem:[%s4] sm:$0x3]
    %v198 = vperm.slane %v196, 0
    %v199 = vperm.slane %v196, 1
    %202 = vmatpush.msra.mxu0 %v162
    %203 = vmatpush.msra.mxu0 %v160
    %204 = vmatpush.msra.mxu0 %v158
    %205 = vmatpush.msra.mxu0 %v156
    %206 = vmatpush.msra.mxu0 %v154
    %207 = vmatpush.msra.mxu0 %v152
    %208 = vmatpush.msra.mxu0 %v150
    %209 = vmatpush.msra.mxu0 %v148
    %210 = vmatpush.msra.mxu0 %v146
    %211 = vmatpush.msra.mxu0 %v144
    %212 = vmatpush.msra.mxu0 %v142
    %213 = vmatpush.msra.mxu0 %v140
    %214 = vmatpush.msra.mxu0 %v138
    %215 = vmatpush.msra.mxu0 %v136
    %216 = vmatpush.msra.mxu0 %v134
    %217 = vmatpush.msra.mxu0 %v132
    %218 = vmatmul.f32.gmra.mxu0 %v130
    %v219 = vpop.f32.mrf.mxu0
    %v220 = vadd.f32 %v198, %v219
    %221 = vdwg.mxu0
    %222 = vmatpush.msra.mxu0 %v194
    %223 = vmatpush.msra.mxu0 %v192
    %224 = vmatpush.msra.mxu0 %v190
    %225 = vmatpush.msra.mxu0 %v188
    %226 = vmatpush.msra.mxu0 %v186
    %227 = vmatpush.msra.mxu0 %v184
    %228 = vmatpush.msra.mxu0 %v182
    %229 = vmatpush.msra.mxu0 %v180
    %230 = vmatpush.msra.mxu0 %v178
    %231 = vmatpush.msra.mxu0 %v176
    %232 = vmatpush.msra.mxu0 %v174
    %233 = vmatpush.msra.mxu0 %v172
    %234 = vmatpush.msra.mxu0 %v170
    %235 = vmatpush.msra.mxu0 %v168
    %236 = vmatpush.msra.mxu0 %v166
    %237 = vmatpush.msra.mxu0 %v164
    %238 = vmatmul.f32.gmra.mxu0 %v131
    %v239 = vpop.f32.mrf.mxu0
    %v240 = vadd.f32 %v220, %v239
    %241 = vdwg.mxu0
    %242 = vmatpush.msra.mxu0 %v163
    %243 = vmatpush.msra.mxu0 %v161
    %244 = vmatpush.msra.mxu0 %v159
    %245 = vmatpush.msra.mxu0 %v157
    %246 = vmatpush.msra.mxu0 %v155
    %247 = vmatpush.msra.mxu0 %v153
    %248 = vmatpush.msra.mxu0 %v151
    %249 = vmatpush.msra.mxu0 %v149
    %250 = vmatpush.msra.mxu0 %v147
    %251 = vmatpush.msra.mxu0 %v145
    %252 = vmatpush.msra.mxu0 %v143
    %253 = vmatpush.msra.mxu0 %v141
    %254 = vmatpush.msra.mxu0 %v139
    %255 = vmatpush.msra.mxu0 %v137
    %256 = vmatpush.msra.mxu0 %v135
    %257 = vmatpush.msra.mxu0 %v133
    %258 = vmatmul.f32.gmra.mxu0 %v130
    %v259 = vpop.f32.mrf.mxu0
    %v260 = vadd.f32 %v199, %v259
    %261 = vdwg.mxu0
    %262 = vmatpush.msra.mxu0 %v195
    %263 = vmatpush.msra.mxu0 %v193
    %264 = vmatpush.msra.mxu0 %v191
    %265 = vmatpush.msra.mxu0 %v189
    %266 = vmatpush.msra.mxu0 %v187
    %267 = vmatpush.msra.mxu0 %v185
    %268 = vmatpush.msra.mxu0 %v183
    %269 = vmatpush.msra.mxu0 %v181
    %270 = vmatpush.msra.mxu0 %v179
    %271 = vmatpush.msra.mxu0 %v177
    %272 = vmatpush.msra.mxu0 %v175
    %273 = vmatpush.msra.mxu0 %v173
    %274 = vmatpush.msra.mxu0 %v171
    %275 = vmatpush.msra.mxu0 %v169
    %276 = vmatpush.msra.mxu0 %v167
    %277 = vmatpush.msra.mxu0 %v165
    %278 = vmatmul.f32.gmra.mxu0 %v131
    %v279 = vpop.f32.mrf.mxu0
    %v280 = vadd.f32 %v260, %v279
    %281 = vdwg.mxu0
    %vm282 = vcmp.gt.f32.partialorder %v240, 20.0
    %vm283 = vcmp.gt.f32.partialorder %v280, 20.0
    %v284 = vmul.f32 %v240, 1.442695
    %v285 = vpow.pop %v284
    %v286 = vmul.f32 %v280, 1.442695
    %v287 = vpow.pop %v286
    %v288 = vadd.f32 %v285, 1.0
    %v289 = vlog2.pop %v288
    %v290 = vmul.f32 %v289, 0.6931472
    %v291 = vmul.f32 -0.5, %v285
    %v292 = vadd.f32 %v291, 1.0
    %v293 = vmul.f32 %v292, %v285
    %v294 = vand.u32 2147483647, %v285
    %vm295 = vcmp.lt.f32.partialorder %v294, 0.0004427343
    %v296 = vsel %vm295, %v293, %v290
    %v297 = vadd.f32 %v287, 1.0
    %v298 = vlog2.pop %v297
    %v299 = vmul.f32 %v298, 0.6931472
    %v300 = vmul.f32 -0.5, %v287
    %v301 = vadd.f32 %v300, 1.0
    %v302 = vmul.f32 %v301, %v287
    %v303 = vand.u32 2147483647, %v287
    %vm304 = vcmp.lt.f32.partialorder %v303, 0.0004427343
    %v305 = vsel %vm304, %v302, %v299
    %v306 = vsel %vm282, %v240, %v296
    %v307 = vsel %vm283, %v280, %v305
    %v308 = vld [vmem:[#allocation5] sm:$0xff]
    %v309 = vld [vmem:[#allocation5 + $0x8] sm:$0xff]
    %v310 = vld [vmem:[#allocation5 + $0x10] sm:$0xff]
    %v311 = vld [vmem:[#allocation5 + $0x18] sm:$0xff]
    %v312 = vld [vmem:[#allocation5 + $0x20] sm:$0xff]
    %v313 = vld [vmem:[#allocation5 + $0x28] sm:$0xff]
    %v314 = vld [vmem:[#allocation5 + $0x30] sm:$0xff]
    %v315 = vld [vmem:[#allocation5 + $0x38] sm:$0xff]
    %v316 = vld [vmem:[#allocation5 + $0x40] sm:$0xff]
    %v317 = vld [vmem:[#allocation5 + $0x48] sm:$0xff]
    %v318 = vld [vmem:[#allocation5 + $0x50] sm:$0xff]
    %v319 = vld [vmem:[#allocation5 + $0x58] sm:$0xff]
    %v320 = vld [vmem:[#allocation5 + $0x60] sm:$0xff]
    %v321 = vld [vmem:[#allocation5 + $0x68] sm:$0xff]
    %v322 = vld [vmem:[#allocation5 + $0x70] sm:$0xff]
    %v323 = vld [vmem:[#allocation5 + $0x78] sm:$0xff]
    %v324 = vld [vmem:[#allocation5 + $0x80] sm:$0xff]
    %v325 = vld [vmem:[#allocation5 + $0x88] sm:$0xff]
    %v326 = vld [vmem:[#allocation5 + $0x90] sm:$0xff]
    %v327 = vld [vmem:[#allocation5 + $0x98] sm:$0xff]
    %v328 = vld [vmem:[#allocation5 + $0xa0] sm:$0xff]
    %v329 = vld [vmem:[#allocation5 + $0xa8] sm:$0xff]
    %v330 = vld [vmem:[#allocation5 + $0xb0] sm:$0xff]
    %v331 = vld [vmem:[#allocation5 + $0xb8] sm:$0xff]
    %v332 = vld [vmem:[#allocation5 + $0xc0] sm:$0xff]
    %v333 = vld [vmem:[#allocation5 + $0xc8] sm:$0xff]
    %v334 = vld [vmem:[#allocation5 + $0xd0] sm:$0xff]
    %v335 = vld [vmem:[#allocation5 + $0xd8] sm:$0xff]
    %v336 = vld [vmem:[#allocation5 + $0xe0] sm:$0xff]
    %v337 = vld [vmem:[#allocation5 + $0xe8] sm:$0xff]
    %v338 = vld [vmem:[#allocation5 + $0xf0] sm:$0xff]
    %v339 = vld [vmem:[#allocation5 + $0xf8] sm:$0xff]
    %v340 = vld [vmem:[%s6] sm:$0x1]
    %v342 = vperm.slane %v340, 0
    %344 = vmatpush.msra.mxu0 %v323
    %345 = vmatpush.msra.mxu0 %v322
    %346 = vmatpush.msra.mxu0 %v321
    %347 = vmatpush.msra.mxu0 %v320
    %348 = vmatpush.msra.mxu0 %v319
    %349 = vmatpush.msra.mxu0 %v318
    %350 = vmatpush.msra.mxu0 %v317
    %351 = vmatpush.msra.mxu0 %v316
    %352 = vmatpush.msra.mxu0 %v315
    %353 = vmatpush.msra.mxu0 %v314
    %354 = vmatpush.msra.mxu0 %v313
    %355 = vmatpush.msra.mxu0 %v312
    %356 = vmatpush.msra.mxu0 %v311
    %357 = vmatpush.msra.mxu0 %v310
    %358 = vmatpush.msra.mxu0 %v309
    %359 = vmatpush.msra.mxu0 %v308
    %360 = vmatmul.f32.gmra.mxu0 %v306
    %v361 = vpop.f32.mrf.mxu0
    %v362 = vadd.f32 %v342, %v361
    %363 = vdwg.mxu0
    %364 = vmatpush.msra.mxu0 %v339
    %365 = vmatpush.msra.mxu0 %v338
    %366 = vmatpush.msra.mxu0 %v337
    %367 = vmatpush.msra.mxu0 %v336
    %368 = vmatpush.msra.mxu0 %v335
    %369 = vmatpush.msra.mxu0 %v334
    %370 = vmatpush.msra.mxu0 %v333
    %371 = vmatpush.msra.mxu0 %v332
    %372 = vmatpush.msra.mxu0 %v331
    %373 = vmatpush.msra.mxu0 %v330
    %374 = vmatpush.msra.mxu0 %v329
    %375 = vmatpush.msra.mxu0 %v328
    %376 = vmatpush.msra.mxu0 %v327
    %377 = vmatpush.msra.mxu0 %v326
    %378 = vmatpush.msra.mxu0 %v325
    %379 = vmatpush.msra.mxu0 %v324
    %380 = vmatmul.f32.gmra.mxu0 %v307
    %v381 = vpop.f32.mrf.mxu0
    %v382 = vadd.f32 %v362, %v381
    %383 = vdwg.mxu0
    %vm384 = vcmp.gt.f32.partialorder %v382, 20.0
    %v385 = vmul.f32 %v382, 1.442695
    %v386 = vpow.pop %v385
    %v387 = vadd.f32 %v386, 1.0
    %v388 = vlog2.pop %v387
    %v389 = vmul.f32 %v388, 0.6931472
    %v390 = vmul.f32 -0.5, %v386
    %v391 = vadd.f32 %v390, 1.0
    %v392 = vmul.f32 %v391, %v386
    %v393 = vand.u32 2147483647, %v386
    %vm394 = vcmp.lt.f32.partialorder %v393, 0.0004427343
    %v395 = vsel %vm394, %v392, %v389
    %v396 = vsel %vm384, %v382, %v395
    %v397 = vld [vmem:[%s7] sm:$0xff]
    %v398 = vld [vmem:[%s7 + $0x8] sm:$0xff]
    %v399 = vld [vmem:[%s7 + $0x10] sm:$0xff]
    %v400 = vld [vmem:[%s7 + $0x18] sm:$0xff]
    %v401 = vld [vmem:[%s7 + $0x20] sm:$0xff]
    %v402 = vld [vmem:[%s7 + $0x28] sm:$0xff]
    %v403 = vld [vmem:[%s7 + $0x30] sm:$0xff]
    %v404 = vld [vmem:[%s7 + $0x38] sm:$0xff]
    %v405 = vld [vmem:[%s7 + $0x40] sm:$0xff]
    %v406 = vld [vmem:[%s7 + $0x48] sm:$0xff]
    %v407 = vld [vmem:[%s7 + $0x50] sm:$0xff]
    %v408 = vld [vmem:[%s7 + $0x58] sm:$0xff]
    %v409 = vld [vmem:[%s7 + $0x60] sm:$0xff]
    %v410 = vld [vmem:[%s7 + $0x68] sm:$0xff]
    %v411 = vld [vmem:[%s7 + $0x70] sm:$0xff]
    %v412 = vld [vmem:[%s7 + $0x78] sm:$0xff]
    %v413 = vld [vmem:[%s8] sm:$0x1]
    %v415 = vperm.slane %v413, 0
    %417 = vmatpush.msra.mxu0 %v412
    %418 = vmatpush.msra.mxu0 %v411
    %419 = vmatpush.msra.mxu0 %v410
    %420 = vmatpush.msra.mxu0 %v409
    %421 = vmatpush.msra.mxu0 %v408
    %422 = vmatpush.msra.mxu0 %v407
    %423 = vmatpush.msra.mxu0 %v406
    %424 = vmatpush.msra.mxu0 %v405
    %425 = vmatpush.msra.mxu0 %v404
    %426 = vmatpush.msra.mxu0 %v403
    %427 = vmatpush.msra.mxu0 %v402
    %428 = vmatpush.msra.mxu0 %v401
    %429 = vmatpush.msra.mxu0 %v400
    %430 = vmatpush.msra.mxu0 %v399
    %431 = vmatpush.msra.mxu0 %v398
    %432 = vmatpush.msra.mxu0 %v397
    %433 = vmatmul.f32.gmra.mxu0 %v396
    %v434 = vpop.f32.mrf.mxu0
    %v435 = vadd.f32 %v415, %v434
    %436 = vdwg.mxu0
    %vm437 = vcmp.gt.f32.partialorder %v435, 20.0
    %v438 = vmul.f32 %v435, 1.442695
    %v439 = vpow.pop %v438
    %v440 = vadd.f32 %v439, 1.0
    %v441 = vlog2.pop %v440
    %v442 = vmul.f32 %v441, 0.6931472
    %v443 = vmul.f32 -0.5, %v439
    %v444 = vadd.f32 %v443, 1.0
    %v445 = vmul.f32 %v444, %v439
    %v446 = vand.u32 2147483647, %v439
    %vm447 = vcmp.lt.f32.partialorder %v446, 0.0004427343
    %v448 = vsel %vm447, %v445, %v442
    %v449 = vsel %vm437, %v435, %v448
    %v450 = vld [vmem:[%s9] sm:$0xff]
    %v451 = vld [vmem:[%s9 + $0x8] sm:$0xff]
    %v452 = vld [vmem:[%s9 + $0x10] sm:$0xff]
    %v453 = vld [vmem:[%s9 + $0x18] sm:$0xff]
    %v454 = vld [vmem:[%s9 + $0x20] sm:$0xff]
    %v455 = vld [vmem:[%s9 + $0x28] sm:$0xff]
    %v456 = vld [vmem:[%s9 + $0x30] sm:$0xff]
    %v457 = vld [vmem:[%s9 + $0x38] sm:$0xff]
    %v458 = vld [vmem:[%s9 + $0x40] sm:$0xff]
    %v459 = vld [vmem:[%s9 + $0x48] sm:$0xff]
    %v460 = vld [vmem:[%s9 + $0x50] sm:$0xff]
    %v461 = vld [vmem:[%s9 + $0x58] sm:$0xff]
    %v462 = vld [vmem:[%s9 + $0x60] sm:$0xff]
    %v463 = vld [vmem:[%s9 + $0x68] sm:$0xff]
    %v464 = vld [vmem:[%s9 + $0x70] sm:$0xff]
    %v465 = vld [vmem:[%s9 + $0x78] sm:$0xff]
    %v466 = vld [vmem:[%s10] sm:$0x1]
    %v468 = vperm.slane %v466, 0
    %470 = vmatpush.msra.mxu0 %v465
    %471 = vmatpush.msra.mxu0 %v464
    %472 = vmatpush.msra.mxu0 %v463
    %473 = vmatpush.msra.mxu0 %v462
    %474 = vmatpush.msra.mxu0 %v461
    %475 = vmatpush.msra.mxu0 %v460
    %476 = vmatpush.msra.mxu0 %v459
    %477 = vmatpush.msra.mxu0 %v458
    %478 = vmatpush.msra.mxu0 %v457
    %479 = vmatpush.msra.mxu0 %v456
    %480 = vmatpush.msra.mxu0 %v455
    %481 = vmatpush.msra.mxu0 %v454
    %482 = vmatpush.msra.mxu0 %v453
    %483 = vmatpush.msra.mxu0 %v452
    %484 = vmatpush.msra.mxu0 %v451
    %485 = vmatpush.msra.mxu0 %v450
    %486 = vmatmul.f32.gmra.mxu0 %v449
    %v487 = vpop.f32.mrf.mxu0
    %v488 = vadd.f32 %v468, %v487
    %489 = vdwg.mxu0
    %vm490 = vcmp.gt.f32.partialorder %v488, 20.0
    %v491 = vmul.f32 %v488, 1.442695
    %v492 = vpow.pop %v491
    %v493 = vadd.f32 %v492, 1.0
    %v494 = vlog2.pop %v493
    %v495 = vmul.f32 %v494, 0.6931472
    %v496 = vmul.f32 -0.5, %v492
    %v497 = vadd.f32 %v496, 1.0
    %v498 = vmul.f32 %v497, %v492
    %v499 = vand.u32 2147483647, %v492
    %vm500 = vcmp.lt.f32.partialorder %v499, 0.0004427343
    %v501 = vsel %vm500, %v498, %v495
    %v502 = vsel %vm490, %v488, %v501
    %v503 = vld [vmem:[%s11] sm:$0xff]
    %v504 = vld [vmem:[%s11 + $0x8] sm:$0xff]
    %v505 = vld [vmem:[%s11 + $0x10] sm:$0xff]
    %v506 = vld [vmem:[%s11 + $0x18] sm:$0xff]
    %v507 = vld [vmem:[%s11 + $0x20] sm:$0xff]
    %v508 = vld [vmem:[%s11 + $0x28] sm:$0xff]
    %v509 = vld [vmem:[%s11 + $0x30] sm:$0xff]
    %v510 = vld [vmem:[%s11 + $0x38] sm:$0xff]
    %v511 = vld [vmem:[%s12] sm:$0x1]
    %v513 = vperm.slane %v511, 0
    %vm515 = vcmask 523264
    %v517 = vsel %vm515, %v502, 0
    %519 = vmatpush.msra.mxu0 0.0
    %520 = vmatpush.msra.mxu0 0.0
    %521 = vmatpush.msra.mxu0 0.0
    %522 = vmatpush.msra.mxu0 0.0
    %523 = vmatpush.msra.mxu0 0.0
    %524 = vmatpush.msra.mxu0 0.0
    %525 = vmatpush.msra.mxu0 0.0
    %526 = vmatpush.msra.mxu0 0.0
    %527 = vmatpush.msra.mxu0 %v510
    %528 = vmatpush.msra.mxu0 %v509
    %529 = vmatpush.msra.mxu0 %v508
    %530 = vmatpush.msra.mxu0 %v507
    %531 = vmatpush.msra.mxu0 %v506
    %532 = vmatpush.msra.mxu0 %v505
    %533 = vmatpush.msra.mxu0 %v504
    %534 = vmatpush.msra.mxu0 %v503
    %535 = vmatmul.f32.gmra.mxu0 %v517
    %v536 = vpop.f32.mrf.mxu0
    %v537 = vadd.f32 %v513, %v536
    %538 = vdwg.mxu0
    %vm539 = vcmp.gt.f32.partialorder %v537, 20.0
    %v540 = vmul.f32 %v537, 1.442695
    %v541 = vpow.pop %v540
    %v542 = vadd.f32 %v541, 1.0
    %v543 = vlog2.pop %v542
    %v544 = vmul.f32 %v543, 0.6931472
    %v545 = vmul.f32 -0.5, %v541
    %v546 = vadd.f32 %v545, 1.0
    %v547 = vmul.f32 %v546, %v541
    %v548 = vand.u32 2147483647, %v541
    %vm549 = vcmp.lt.f32.partialorder %v548, 0.0004427343
    %v550 = vsel %vm549, %v547, %v544
    %v551 = vsel %vm539, %v537, %v550
    %v552 = vld [vmem:[%s13] sm:$0x1]
    %v554 = vperm.slane %v552, 0
    %v556 = vmul.f32 %v551, %v554
    %v557 = vsel %vm515, %v556, 0.0
    %558 = vadd.xlane.f32.xlu0 %v557
    %v559 = vpop.xlane.xlu0 %558
    %v560 = vld [vmem:[#allocation2] sm:$0x1]
    %v562 = vperm.slane %v560, 0
    %v564 = vadd.f32 %v559, %v562
    %v565 = vmul.f32 %v564, 1.442695
    %v566 = vpow.pop %v565
    %vm567 = vcmask 7168
    %568 = vst.msk [vmem:[%s15] sm:$0xff] %vm567, %v566
    // Predicated region
    $region70: #{tpu_custom_call.1} parent=1 // pred_check
      _
    $region71: #{tpu_custom_call.1} parent=1 // pred_check_branch
      %570 = sbr.rel (0) target = $region73
    $region72: #{tpu_custom_call.1} parent=1 // pred_region
      _
    $region73: #{tpu_custom_call.1} parent=1 // pred_fallthru
      _
    // Predicated region
    $region74: #{tpu_custom_call.1} parent=1 // pred_check
      _
    $region75: #{tpu_custom_call.1} parent=1 // pred_check_branch
      %572 = sbr.rel (0) target = $region77
    $region76: #{tpu_custom_call.1} parent=1 // pred_region
      _
    $region77: #{tpu_custom_call.1} parent=1 // pred_fallthru
      _
    %573 = vsyncpa [#allocation4], 1
    %574 = vsyncpa [#allocation6], 1

</llo_original>
